<compile_context>
chip_gen: v5e
topology: v5e:2x2
jax: 0.10.0
libtpu: 0.0.40
codegen_flags: <defaults>
</compile_context>

<pallas_src>
import jax
import jax.numpy as jnp
from jax import lax
from jax.experimental import pallas as pl
from jax.experimental.pallas import tpu as pltpu


def _upconv_matmul_kernel(w_ref, b_ref, x_ref, o_ref):
    # w_ref: (Cout*4, Cin)  b_ref: (Cout*4, 1)  x_ref: (Cin, TM)  o_ref: (Cout*4, TM)
    acc = jnp.dot(w_ref[...], x_ref[...], preferred_element_type=jnp.float32)
    o_ref[...] = (acc + b_ref[...]).astype(o_ref.dtype)


def conv_transpose_2x2_stride2(x1, weight, bias, *, tm_max=512):
    """ConvTranspose2d(kernel=2, stride=2) via a tiled Pallas matmul kernel.

    x1:     (N, Cin, H, W)    float32
    weight: (Cin, Cout, 2, 2) float32  (PyTorch ConvTranspose2d layout)
    bias:   (Cout,)           float32
    returns (N, Cout, 2H, 2W) float32
    """
    N, Cin, H, W = x1.shape
    Cout = weight.shape[1]
    Cout4 = Cout * 4
    M = N * H * W

    # Channels-first layout: lane axis = M for both x and the output (lane-dense tiles).
    x_cm = jnp.transpose(x1, (1, 0, 2, 3)).reshape(Cin, M)               # (Cin, M)
    w_flat = jnp.transpose(weight.reshape(Cin, Cout4), (1, 0))           # (Cout*4, Cin)
    b_flat = jnp.repeat(bias, 4).reshape(Cout4, 1)                       # (Cout*4, 1)

    # Tile M; pad it up to a multiple of the tile size (multiple of 128).
    m_aligned = ((M + 127) // 128) * 128
    TM = min(tm_max, m_aligned)
    Mp = pl.cdiv(M, TM) * TM
    if Mp != M:
        x_cm = jnp.pad(x_cm, ((0, 0), (0, Mp - M)))

    grid = (Mp // TM,)

    cost = pl.CostEstimate(
        flops=2 * M * Cin * Cout4,
        transcendentals=0,
        bytes_accessed=4 * (Cin * Mp + Cout4 * Cin + Cout4 + Cout4 * Mp),
    )

    out_flat = pl.pallas_call(
        _upconv_matmul_kernel,
        out_shape=jax.ShapeDtypeStruct((Cout4, Mp), jnp.float32),
        grid=grid,
        in_specs=[
            pl.BlockSpec((Cout4, Cin), lambda i: (0, 0)),   # weights: resident
            pl.BlockSpec((Cout4, 1), lambda i: (0, 0)),     # bias: resident
            pl.BlockSpec((Cin, TM), lambda i: (0, i)),      # x: streamed over M
        ],
        out_specs=pl.BlockSpec((Cout4, TM), lambda i: (0, i)),
        compiler_params=pltpu.CompilerParams(
            dimension_semantics=("parallel",)),
        cost_estimate=cost,
    )(w_flat, b_flat, x_cm)

    out_flat = out_flat[:, :M]
    # (Cout*4, M) -> (Cout,2,2,N,H,W) -> (N,Cout,H,2,W,2) -> (N,Cout,2H,2W)
    out = out_flat.reshape(Cout, 2, 2, N, H, W)
    out = jnp.transpose(out, (3, 0, 4, 1, 5, 2)).reshape(N, Cout, 2 * H, 2 * W)
    return out


def up_forward(x1, x2, weight, bias):
    """Forward pass of `Up`: upsample x1, pad/crop to x2's spatial size, concat on channels."""
    x1_up = conv_transpose_2x2_stride2(x1, weight, bias)

    diffY = x2.shape[2] - x1_up.shape[2]
    diffX = x2.shape[3] - x1_up.shape[3]
    top, bottom = diffY // 2, diffY - diffY // 2
    left, right = diffX // 2, diffX - diffX // 2
    # lax.pad handles negative amounts (crop), matching torch.nn.functional.pad semantics.
    x1_up = lax.pad(
        x1_up,
        jnp.array(0, x1_up.dtype),
        ((0, 0, 0), (0, 0, 0), (top, bottom, 0), (left, right, 0)),
    )
    # TODO(synk): channel concat (and pad) stay as XLA data movement; fusing them into the
    # kernel via an offset output index_map + input_output_aliases is a further optimization.
    return jnp.concatenate([x2, x1_up], axis=1)


if __name__ == "__main__":
    key = jax.random.PRNGKey(0)
    k1, k2, k3, k4 = jax.random.split(key, 4)

    in_channels, out_channels = 8, 4
    N, H, W = 2, 8, 8            # x1 spatial
    H2, W2 = 2 * H, 2 * W        # x2 spatial matches upsampled x1

    x1 = jax.random.normal(k1, (N, in_channels, H, W), dtype=jnp.float32)
    x2 = jax.random.normal(k2, (N, out_channels, H2, W2), dtype=jnp.float32)

    # PyTorch ConvTranspose2d weight layout: (Cin, Cout, kH, kW)
    weight = 0.1 * jax.random.normal(
        k3, (in_channels, out_channels, 2, 2), dtype=jnp.float32)
    bias = 0.1 * jax.random.normal(k4, (out_channels,), dtype=jnp.float32)

    out = jax.block_until_ready(up_forward(x1, x2, weight, bias))
    assert out.shape == (N, out_channels + out_channels, H2, W2)

    # Pure-JAX reference (transposed conv with k=2, s=2 as an einsum + interleave).
    ref_up = jnp.einsum("nchw,cokl->nohwkl", x1, weight)                  # (N,Cout,H,W,2,2)
    ref_up = jnp.transpose(ref_up, (0, 1, 2, 4, 3, 5)).reshape(
        N, out_channels, H2, W2)
    ref_up = ref_up + bias[None, :, None, None]
    ref = jnp.concatenate([x2, ref_up], axis=1)
    assert jnp.allclose(out, ref, atol=1e-5), "mismatch vs reference"

    print("KERNEL_OK")
</pallas_src>

<mosaic_0001>
module attributes {stable_mosaic.version = 11 : i64} {
  func.func @_upconv_matmul_kernel(%arg0: i32, %arg1: memref<16x8xf32, #tpu.memory_space<vmem>>, %arg2: memref<16x1xf32, #tpu.memory_space<vmem>>, %arg3: memref<8x128xf32, #tpu.memory_space<vmem>>, %arg4: memref<16x128xf32, #tpu.memory_space<vmem>>) attributes {dimension_semantics = [#tpu.dimension_semantics<parallel>], iteration_bounds = array<i64: 1>, scalar_prefetch = 0 : i64, scratch_operands = 0 : i64, tpu.core_type = #tpu.core_type<tc>, window_params = [{pipeline_mode = #tpu.pipeline_mode<synchronous>, transform_indices = @transform_0, window_bounds = array<i64: 16, 8>}, {pipeline_mode = #tpu.pipeline_mode<synchronous>, transform_indices = @transform_1, window_bounds = array<i64: 16, 1>}, {transform_indices = @transform_2, window_bounds = array<i64: 8, 128>}, {transform_indices = @transform_3, window_bounds = array<i64: 16, 128>}]} {
    %c0 = arith.constant 0 : index
    %c0_0 = arith.constant 0 : index
    %0 = vector.load %arg1[%c0, %c0_0] : memref<16x8xf32, #tpu.memory_space<vmem>>, vector<16x8xf32>
    %c0_1 = arith.constant 0 : index
    %c0_2 = arith.constant 0 : index
    %1 = vector.load %arg3[%c0_1, %c0_2] : memref<8x128xf32, #tpu.memory_space<vmem>>, vector<8x128xf32>
    %cst = arith.constant dense<0.000000e+00> : vector<16x128xf32>
    %2 = tpu.matmul %0, %1, %cst {dimension_numbers = #tpu.dot_dimension_numbers<[1], [0], [0], [1], [0, 0, 1, 1], [], []>} : vector<16x8xf32>, vector<8x128xf32>, vector<16x128xf32> -> vector<16x128xf32>
    %c0_3 = arith.constant 0 : index
    %c0_4 = arith.constant 0 : index
    %3 = vector.load %arg2[%c0_3, %c0_4] : memref<16x1xf32, #tpu.memory_space<vmem>>, vector<16x1xf32>
    %4 = vector.broadcast %3 : vector<16x1xf32> to vector<16x128xf32>
    %5 = arith.addf %2, %4 : vector<16x128xf32>
    %c0_5 = arith.constant 0 : index
    %c0_6 = arith.constant 0 : index
    %6 = vector.load %arg4[%c0_5, %c0_6] : memref<16x128xf32, #tpu.memory_space<vmem>>, vector<16x128xf32>
    tpu.vector_store %arg4[%c0_5, %c0_6], %5 {strides = array<i32>} : memref<16x128xf32, #tpu.memory_space<vmem>>, vector<16x128xf32>,
    return
  }
  func.func @transform_0(%arg0: i32) -> (i32, i32) {
    %c0_i32 = arith.constant 0 : i32
    %c0_i32_0 = arith.constant 0 : i32
    %c0_i32_1 = arith.constant 0 : i32
    return %c0_i32, %c0_i32_0 : i32, i32
  }
  func.func @transform_1(%arg0: i32) -> (i32, i32) {
    %c0_i32 = arith.constant 0 : i32
    %c0_i32_0 = arith.constant 0 : i32
    %c0_i32_1 = arith.constant 0 : i32
    return %c0_i32, %c0_i32_0 : i32, i32
  }
  func.func @transform_2(%arg0: i32) -> (i32, i32) {
    %c0_i32 = arith.constant 0 : i32
    %c0_i32_0 = arith.constant 0 : i32
    return %c0_i32, %arg0 : i32, i32
  }
  func.func @transform_3(%arg0: i32) -> (i32, i32) {
    %c0_i32 = arith.constant 0 : i32
    %c0_i32_0 = arith.constant 0 : i32
    return %c0_i32, %arg0 : i32, i32
  }
}

</mosaic_0001>

<llo_original>
// kernel: tpu_custom_call.1
$region0: #{tpu_custom_call.1}
  #allocation0 [shape = 'u32[]', space=smem, size = 0x4, offset = 0x4, fixed_abs, tag = 'smem constant byte address 0x4 - core index']
  #allocation1 [shape = 'u32[72,128]{1,0:T(1,128)}', space=vmem, size = 0x9000, scoped, tag = 'internal scratch']
  %s0 = inlined_call_operand.vmem [shape: f32[16,8], index: 0, kind: input, shape index: {}]
  %s1 = inlined_call_operand.vmem [shape: f32[16,1], index: 1, kind: input, shape index: {}]
  %s2 = inlined_call_operand.vmem [shape: f32[8,128], index: 2, kind: input, shape index: {}]
  %s3 = inlined_call_operand.hbm [shape: f32[16,128], index: 3, kind: output, shape index: {}]
  %s4 = sld [smem:[#allocation0]]
  $region22: #{tpu_custom_call.1} parent=0
    _
  %s6 = ssub.s32 1, %s4
  %s7 = scalar_select 0, %s6, %s4
  $region1: #{tpu_custom_call.1} parent=0
    #allocation2 [shape = 'u8[8192]{0}', space=vmem, size = 0x2000, scoped, tag = 'output window, operand 0, single buffered']
    #allocation3 [shape = 's32[1]{0}', space=sflag, size = 0x4, scoped, tag = 'scoped memory for tpu_custom_call.1']
    %8 = vsyncpa [#allocation3], 0
    // Predicated region
    $region2: #{tpu_custom_call.1} parent=1 // pred_check
      _
    $region3: #{tpu_custom_call.1} parent=1 // pred_check_branch
      %10 = sbr.rel (0) target = $region5
    $region4: #{tpu_custom_call.1} parent=1 // pred_region
      _
    $region5: #{tpu_custom_call.1} parent=1 // pred_fallthru
      _
    // Predicated region
    $region6: #{tpu_custom_call.1} parent=1 // pred_check
      _
    $region7: #{tpu_custom_call.1} parent=1 // pred_check_branch
      %12 = sbr.rel (0) target = $region9
    $region8: #{tpu_custom_call.1} parent=1 // pred_region
      _
    $region9: #{tpu_custom_call.1} parent=1 // pred_fallthru
      _
    // Predicated region
    $region10: #{tpu_custom_call.1} parent=1 // pred_check
      _
    $region11: #{tpu_custom_call.1} parent=1 // pred_check_branch
      %14 = sbr.rel (0) target = $region13
    $region12: #{tpu_custom_call.1} parent=1 // pred_region
      _
    $region13: #{tpu_custom_call.1} parent=1 // pred_fallthru
      _
    %v15 = vld [vmem:[%s0] sm:$0xff]
    %v16 = vld [vmem:[%s0 + $0x8] sm:$0xff]
    %v17 = vld [vmem:[%s2] sm:$0xff]
    %v18 = vld [vmem:[%s1] sm:$0xff]
    %v19 = vld [vmem:[%s1 + $0x8] sm:$0xff]
    %21 = vset.pattern.permute.xlu0 0
    %22 = vperm.xlu0 %21, %v18
    %v23 = vpop.permute.xlu0 %22
    %26 = vset.pattern.permute.xlu0 0
    %27 = vperm.xlu0 %26, %v19
    %v28 = vpop.permute.xlu0 %27
    %vm30 = vcmask 64512
    %v32 = vsel %vm30, %v15, 0
    %v35 = vsel %vm30, %v16, 0
    %37 = vmatpush.msra.mxu0 0.0
    %38 = vmatpush.msra.mxu0 0.0
    %39 = vmatpush.msra.mxu0 0.0
    %40 = vmatpush.msra.mxu0 0.0
    %41 = vmatpush.msra.mxu0 0.0
    %42 = vmatpush.msra.mxu0 0.0
    %43 = vmatpush.msra.mxu0 0.0
    %44 = vmatpush.msra.mxu0 0.0
    %45 = vmatpush.msra.mxu0 0.0
    %46 = vmatpush.msra.mxu0 0.0
    %47 = vmatpush.msra.mxu0 0.0
    %48 = vmatpush.msra.mxu0 0.0
    %49 = vmatpush.msra.mxu0 0.0
    %50 = vmatpush.msra.mxu0 0.0
    %51 = vmatpush.msra.mxu0 0.0
    %52 = vmatpush.msra.mxu0 %v17
    %53 = vmatmul.f32.gmra.mxu0 %v32
    %v54 = vpop.f32.mrf.mxu0
    %v55 = vadd.f32 %v23, %v54
    %56 = vmatmul.f32.gmra.mxu0 %v35
    %v57 = vpop.f32.mrf.mxu0
    %v58 = vadd.f32 %v28, %v57
    %59 = vdwg.mxu0
    %60 = vst [vmem:[#allocation2] sm:$0xff] %v55
    %61 = vst [vmem:[#allocation2 + $0x8] sm:$0xff] %v58
    // Predicated region
    $region14: #{tpu_custom_call.1} parent=1 // pred_check
      _
    $region15: #{tpu_custom_call.1} parent=1 // pred_check_branch
      %63 = sbr.rel (0) target = $region17
    $region16: #{tpu_custom_call.1} parent=1 // pred_region
      %65 = vsyncadd [#allocation3], 0
      %s66 = sshll.u32 [#allocation2], 4
      %s67 = int_to_ptr.vmem [resolvable:$true] %s66
      %s68 = sshll.u32 %s3, 4
      %s69 = int_to_ptr.hbm [resolvable:$true] %s68
      %74 = dma.vmem_to_hbm [thread:$0]  %s67, 256, %s69, [#allocation3], 128, 128, 8
    $region17: #{tpu_custom_call.1} parent=1 // pred_fallthru
      _
    // Predicated region
    $region18: #{tpu_custom_call.1} parent=1 // pred_check
      _
    $region19: #{tpu_custom_call.1} parent=1 // pred_check_branch
      %76 = sbr.rel (0) target = $region21
    $region20: #{tpu_custom_call.1} parent=1 // pred_region
      %78 = dma.done [#allocation3], 256
    $region21: #{tpu_custom_call.1} parent=1 // pred_fallthru
      _
    %79 = vsyncpa [#allocation3], 1

</llo_original>
